<compile_context>
chip_gen: v5e
topology: v5e:2x2
jax: 0.10.0
libtpu: 0.0.40
codegen_flags: <defaults>
</compile_context>

<pallas_src>
import jax
import jax.numpy as jnp
import numpy as np
from jax.experimental import pallas as pl
from jax.experimental.pallas import tpu as pltpu

HIDDEN = 32
SEQ = 3          # implied by fc1 in_features = 3 * 32
IN_SIZE = 1


def _round_up(n, m):
    return ((n + m - 1) // m) * m


def lstm_mlp_kernel(x_ref, w_ih_ref, w_hh_ref, b_ref,
                    w12_ref, b12_ref, w3_ref, b3_ref, out_ref):
    """Batch-transposed forward: 3-step LSTM -> relu -> fused fc1+fc2 -> relu -> fc3.

    Batch is on the lane (last) axis everywhere.

    x_ref   : (SEQ, TB)      inputs (input_size == 1, squeezed & transposed)
    w_ih_ref: (4H, 1)        W_ih (PyTorch layout; input_size == 1)
    w_hh_ref: (4H, H)        W_hh (PyTorch layout)
    b_ref   : (4H, 1)        b_ih + b_hh
    w12_ref : (SEQ, 8, H)    fused (W2 @ W1), split into per-timestep blocks
    b12_ref : (8, 1)         W2 @ b1 + b2
    w3_ref  : (8, 1)         W3^T
    b3_ref  : (1, 1)
    out_ref : (1, TB)        lane-dense output row
    """
    H = HIDDEN
    x = x_ref[...]                               # (SEQ, TB)
    w_ih = w_ih_ref[...]                         # (4H, 1)
    w_hh = w_hh_ref[...]                         # (4H, H)
    b = b_ref[...]                               # (4H, 1)

    def sigmoid1(v):
        # Single-pass EUP sigmoid: 0.5*tanh(0.5*v) + 0.5 (exact algebra).
        return 0.5 * jnp.tanh(0.5 * v) + 0.5

    # PyTorch gate order: rows [0:H)=i, [H:2H)=f, [2H:3H)=g, [3H:4H)=o.
    def gate_pre(g, x_t, h):
        """Pre-activation of one 32-row gate slice: (H, TB)."""
        sl = slice(g * H, (g + 1) * H)
        pre = w_ih[sl, :] * x_t + b[sl, :]       # (H,1)*(1,TB) bcast (input_size==1)
        if h is not None:
            pre = pre + jnp.dot(w_hh[sl, :], h,  # (H,H)@(H,TB)
                                preferred_element_type=jnp.float32)
        return pre

    # ---- t == 0, specialized for h0 = c0 = 0: no W_hh dot, no forget gate. ----
    x0 = x[0:1, :]                               # (1, TB)
    i_g = sigmoid1(gate_pre(0, x0, None))
    g_g = jnp.tanh(gate_pre(2, x0, None))
    o_g = sigmoid1(gate_pre(3, x0, None))
    c = i_g * g_g                                # f_g * c0 == 0
    h = o_g * jnp.tanh(c)
    h_relu = jnp.maximum(h, 0.0)                 # relu applied to LSTM outputs
    # Fused fc1@fc2 accumulated per timestep (replaces concat + 2 matmuls).
    acc = jnp.dot(w12_ref[0], h_relu, preferred_element_type=jnp.float32)  # (8, TB)

    # ---- t = 1 .. SEQ-1: gate-sliced so only (32,TB) slabs stay live. ----
    for t in range(1, SEQ):                      # static unroll
        x_t = x[t:t + 1, :]                      # (1, TB)
        i_g = sigmoid1(gate_pre(0, x_t, h))
        f_g = sigmoid1(gate_pre(1, x_t, h))
        g_g = jnp.tanh(gate_pre(2, x_t, h))
        o_g = sigmoid1(gate_pre(3, x_t, h))
        c = f_g * c + i_g * g_g
        h = o_g * jnp.tanh(c)
        h_relu = jnp.maximum(h, 0.0)
        acc = acc + jnp.dot(w12_ref[t], h_relu,
                            preferred_element_type=jnp.float32)

    z = jnp.maximum(acc + b12_ref[...], 0.0)     # relu after fc2, (8, TB)
    # fc3 (N == 1): VPU broadcast-multiply + sublane reduce instead of MXU.
    out = jnp.sum(z * w3_ref[...], axis=0, keepdims=True) + b3_ref[...]
    out_ref[...] = out.astype(out_ref.dtype)     # lane-dense (1, TB) store


def lstm_forward(x, kparams, *, max_tb=512):
    """x: (B, SEQ, 1) float32 -> (B, 1) float32."""
    B = x.shape[0]
    H = HIDDEN
    (w_ih, w_hh, b, w12, b12, w3, b3) = kparams

    # Lane tile: multiple of 128, capped at max_tb (vreg / v5e-vst friendly),
    # and sized so the grid has >= 2 steps whenever B allows it so the
    # "parallel" batch axis can shard across both v7x TensorCores.
    half = -(-B // 2)
    TB = max(128, min(max_tb, _round_up(half, 128)))
    B_pad = _round_up(B, TB)
    G = B_pad // TB

    x_t = x.reshape(B, SEQ).T                    # (SEQ, B), input_size == 1
    if B_pad != B:
        x_t = jnp.pad(x_t, ((0, 0), (0, B_pad - B)))

    def const(shape):
        return pl.BlockSpec(shape, lambda i, _s=len(shape): (0,) * _s)

    cost = pl.CostEstimate(
        flops=int(B_pad * ((SEQ - 1) * 2 * 4 * H * H      # recurrence dots
                           + SEQ * (2 * 8 * H)            # fused fc1@fc2
                           + SEQ * 10 * H + 2 * 8)),      # elementwise-ish
        transcendentals=int(B_pad * (5 + 6 * (SEQ - 1)) * H),
        bytes_accessed=int(B_pad * (SEQ + 1) * 4 + 24 * 1024),
    )

    out = pl.pallas_call(
        lstm_mlp_kernel,
        out_shape=jax.ShapeDtypeStruct((1, B_pad), jnp.float32),
        grid=(G,),
        in_specs=[
            pl.BlockSpec((SEQ, TB), lambda i: (0, i)),   # x: streamed per batch tile
            const((4 * H, 1)),                           # W_ih        (resident)
            const((4 * H, H)),                           # W_hh        (resident)
            const((4 * H, 1)),                           # b_ih + b_hh (resident)
            const((SEQ, 8, H)),                          # fused W2@W1 (resident)
            const((8, 1)),                               # fused bias  (resident)
            const((8, 1)),                               # W3^T        (resident)
            const((1, 1)),                               # b3          (resident)
        ],
        out_specs=pl.BlockSpec((1, TB), lambda i: (0, i)),
        compiler_params=pltpu.CompilerParams(
            dimension_semantics=("parallel",),
        ),
        cost_estimate=cost,
    )(x_t, w_ih, w_hh, b, w12, b12, w3, b3)

    return out[0, :B].reshape(B, 1)


def init_raw_params(key):
    """PyTorch-shaped parameters with PyTorch-style uniform(+-1/sqrt(fan)) init."""
    H = HIDDEN
    ks = jax.random.split(key, 10)
    s = 1.0 / np.sqrt(H)
    w_ih = jax.random.uniform(ks[0], (4 * H, IN_SIZE), jnp.float32, -s, s)
    w_hh = jax.random.uniform(ks[1], (4 * H, H), jnp.float32, -s, s)
    b_ih = jax.random.uniform(ks[2], (4 * H,), jnp.float32, -s, s)
    b_hh = jax.random.uniform(ks[3], (4 * H,), jnp.float32, -s, s)

    def linear(kw, kb, fan_in, fan_out):
        sl = 1.0 / np.sqrt(fan_in)
        w = jax.random.uniform(kw, (fan_out, fan_in), jnp.float32, -sl, sl)
        bb = jax.random.uniform(kb, (fan_out,), jnp.float32, -sl, sl)
        return w, bb

    w1, b1 = linear(ks[4], ks[5], SEQ * H, 16)
    w2, b2 = linear(ks[6], ks[7], 16, 8)
    w3, b3 = linear(ks[8], ks[9], 8, 1)
    return (w_ih, w_hh, b_ih, b_hh, w1, b1, w2, b2, w3, b3)


def prepare_kernel_params(raw):
    """Host-side prep: fold biases, fuse fc1/fc2 (exact: no activation between
    fc1 and fc2 in the PyTorch forward), transpose for the lane layout."""
    (w_ih, w_hh, b_ih, b_hh, w1, b1, w2, b2, w3, b3) = raw
    H = HIDDEN
    w12 = w2 @ w1                                           # (8, 96) = W2 @ W1
    w12_blocks = w12.reshape(8, SEQ, H).transpose(1, 0, 2)  # (SEQ, 8, H)
    b12 = (w2 @ b1 + b2).reshape(8, 1)
    return (
        w_ih.reshape(4 * H, 1),                             # (128, 1)
        w_hh,                                               # (128, 32)
        (b_ih + b_hh).reshape(4 * H, 1),                    # (128, 1)
        w12_blocks,                                         # (3, 8, 32)
        b12,                                                # (8, 1)
        w3.reshape(8, 1),                                    # (8, 1)
        b3.reshape(1, 1),                                    # (1, 1)
    )


def reference_forward(x, raw):
    """Pure-JAX replica of the PyTorch module for verification."""
    (w_ih, w_hh, b_ih, b_hh, w1, b1, w2, b2, w3, b3) = raw
    B = x.shape[0]
    H = HIDDEN
    h = jnp.zeros((B, H), jnp.float32)
    c = jnp.zeros((B, H), jnp.float32)
    hs = []
    for t in range(SEQ):
        x_t = x[:, t, :]                                    # (B, 1)
        gates = x_t @ w_ih.T + h @ w_hh.T + b_ih + b_hh
        i_g = jax.nn.sigmoid(gates[:, 0 * H:1 * H])
        f_g = jax.nn.sigmoid(gates[:, 1 * H:2 * H])
        g_g = jnp.tanh(gates[:, 2 * H:3 * H])
        o_g = jax.nn.sigmoid(gates[:, 3 * H:4 * H])
        c = f_g * c + i_g * g_g
        h = o_g * jnp.tanh(c)
        hs.append(jax.nn.relu(h))
    feat = jnp.concatenate(hs, axis=1)                      # (B, 96)
    z = feat @ w1.T + b1
    z = z @ w2.T + b2
    z = jax.nn.relu(z)
    return z @ w3.T + b3


if __name__ == "__main__":
    key = jax.random.PRNGKey(0)
    k_x, k_p = jax.random.split(key)
    B = 8
    x = jax.random.normal(k_x, (B, SEQ, IN_SIZE), dtype=jnp.float32)

    raw = init_raw_params(k_p)
    kparams = prepare_kernel_params(raw)

    out = lstm_forward(x, kparams)
    out = jax.block_until_ready(out)

    ref = reference_forward(x, raw)
    np.testing.assert_allclose(np.asarray(out), np.asarray(ref),
                               rtol=1e-4, atol=1e-5)

    print("KERNEL_OK")
</pallas_src>

<mosaic_0001>
module attributes {stable_mosaic.version = 11 : i64} {
  func.func @lstm_mlp_kernel(%arg0: i32, %arg1: memref<3x128xf32, #tpu.memory_space<vmem>>, %arg2: memref<128x1xf32, #tpu.memory_space<vmem>>, %arg3: memref<128x32xf32, #tpu.memory_space<vmem>>, %arg4: memref<128x1xf32, #tpu.memory_space<vmem>>, %arg5: memref<3x8x32xf32, #tpu.memory_space<vmem>>, %arg6: memref<8x1xf32, #tpu.memory_space<vmem>>, %arg7: memref<8x1xf32, #tpu.memory_space<vmem>>, %arg8: memref<1x1xf32, #tpu.memory_space<vmem>>, %arg9: memref<1x128xf32, #tpu.memory_space<vmem>>) attributes {dimension_semantics = [#tpu.dimension_semantics<parallel>], iteration_bounds = array<i64: 1>, scalar_prefetch = 0 : i64, scratch_operands = 0 : i64, tpu.core_type = #tpu.core_type<tc>, window_params = [{transform_indices = @transform_0, window_bounds = array<i64: 3, 128>}, {pipeline_mode = #tpu.pipeline_mode<synchronous>, transform_indices = @transform_1, window_bounds = array<i64: 128, 1>}, {pipeline_mode = #tpu.pipeline_mode<synchronous>, transform_indices = @transform_2, window_bounds = array<i64: 128, 32>}, {pipeline_mode = #tpu.pipeline_mode<synchronous>, transform_indices = @transform_3, window_bounds = array<i64: 128, 1>}, {pipeline_mode = #tpu.pipeline_mode<synchronous>, transform_indices = @transform_4, window_bounds = array<i64: 3, 8, 32>}, {pipeline_mode = #tpu.pipeline_mode<synchronous>, transform_indices = @transform_5, window_bounds = array<i64: 8, 1>}, {pipeline_mode = #tpu.pipeline_mode<synchronous>, transform_indices = @transform_6, window_bounds = array<i64: 8, 1>}, {pipeline_mode = #tpu.pipeline_mode<synchronous>, transform_indices = @transform_7, window_bounds = array<i64: 1, 1>}, {transform_indices = @transform_8, window_bounds = array<i64: 1, 128>}]} {
    %c0 = arith.constant 0 : index
    %c0_0 = arith.constant 0 : index
    %0 = vector.load %arg1[%c0, %c0_0] : memref<3x128xf32, #tpu.memory_space<vmem>>, vector<3x128xf32>
    %c0_1 = arith.constant 0 : index
    %c0_2 = arith.constant 0 : index
    %1 = vector.load %arg2[%c0_1, %c0_2] : memref<128x1xf32, #tpu.memory_space<vmem>>, vector<128x1xf32>
    %c0_3 = arith.constant 0 : index
    %c0_4 = arith.constant 0 : index
    %2 = vector.load %arg3[%c0_3, %c0_4] : memref<128x32xf32, #tpu.memory_space<vmem>>, vector<128x32xf32>
    %c0_5 = arith.constant 0 : index
    %c0_6 = arith.constant 0 : index
    %3 = vector.load %arg4[%c0_5, %c0_6] : memref<128x1xf32, #tpu.memory_space<vmem>>, vector<128x1xf32>
    %4 = vector.extract_strided_slice %0 {offsets = [0, 0], sizes = [1, 128], strides = [1, 1]} : vector<3x128xf32> to vector<1x128xf32>
    %5 = vector.extract_strided_slice %1 {offsets = [0, 0], sizes = [32, 1], strides = [1, 1]} : vector<128x1xf32> to vector<32x1xf32>
    %6 = vector.broadcast %5 : vector<32x1xf32> to vector<32x128xf32>
    %7 = vector.broadcast %4 : vector<1x128xf32> to vector<32x128xf32>
    %8 = arith.mulf %6, %7 : vector<32x128xf32>
    %9 = vector.extract_strided_slice %3 {offsets = [0, 0], sizes = [32, 1], strides = [1, 1]} : vector<128x1xf32> to vector<32x1xf32>
    %10 = vector.broadcast %9 : vector<32x1xf32> to vector<32x128xf32>
    %11 = arith.addf %8, %10 : vector<32x128xf32>
    %cst = arith.constant 5.000000e-01 : f32
    %12 = vector.broadcast %cst : f32 to vector<32x128xf32>
    %13 = arith.mulf %12, %11 : vector<32x128xf32>
    %14 = math.tanh %13 : vector<32x128xf32>
    %cst_7 = arith.constant 5.000000e-01 : f32
    %15 = vector.broadcast %cst_7 : f32 to vector<32x128xf32>
    %16 = arith.mulf %15, %14 : vector<32x128xf32>
    %cst_8 = arith.constant 5.000000e-01 : f32
    %17 = vector.broadcast %cst_8 : f32 to vector<32x128xf32>
    %18 = arith.addf %16, %17 : vector<32x128xf32>
    %19 = vector.extract_strided_slice %1 {offsets = [64, 0], sizes = [32, 1], strides = [1, 1]} : vector<128x1xf32> to vector<32x1xf32>
    %20 = vector.broadcast %19 : vector<32x1xf32> to vector<32x128xf32>
    %21 = vector.broadcast %4 : vector<1x128xf32> to vector<32x128xf32>
    %22 = arith.mulf %20, %21 : vector<32x128xf32>
    %23 = vector.extract_strided_slice %3 {offsets = [64, 0], sizes = [32, 1], strides = [1, 1]} : vector<128x1xf32> to vector<32x1xf32>
    %24 = vector.broadcast %23 : vector<32x1xf32> to vector<32x128xf32>
    %25 = arith.addf %22, %24 : vector<32x128xf32>
    %26 = math.tanh %25 : vector<32x128xf32>
    %27 = vector.extract_strided_slice %1 {offsets = [96, 0], sizes = [32, 1], strides = [1, 1]} : vector<128x1xf32> to vector<32x1xf32>
    %28 = vector.broadcast %27 : vector<32x1xf32> to vector<32x128xf32>
    %29 = vector.broadcast %4 : vector<1x128xf32> to vector<32x128xf32>
    %30 = arith.mulf %28, %29 : vector<32x128xf32>
    %31 = vector.extract_strided_slice %3 {offsets = [96, 0], sizes = [32, 1], strides = [1, 1]} : vector<128x1xf32> to vector<32x1xf32>
    %32 = vector.broadcast %31 : vector<32x1xf32> to vector<32x128xf32>
    %33 = arith.addf %30, %32 : vector<32x128xf32>
    %cst_9 = arith.constant 5.000000e-01 : f32
    %34 = vector.broadcast %cst_9 : f32 to vector<32x128xf32>
    %35 = arith.mulf %34, %33 : vector<32x128xf32>
    %36 = math.tanh %35 : vector<32x128xf32>
    %cst_10 = arith.constant 5.000000e-01 : f32
    %37 = vector.broadcast %cst_10 : f32 to vector<32x128xf32>
    %38 = arith.mulf %37, %36 : vector<32x128xf32>
    %cst_11 = arith.constant 5.000000e-01 : f32
    %39 = vector.broadcast %cst_11 : f32 to vector<32x128xf32>
    %40 = arith.addf %38, %39 : vector<32x128xf32>
    %41 = arith.mulf %18, %26 : vector<32x128xf32>
    %42 = math.tanh %41 : vector<32x128xf32>
    %43 = arith.mulf %40, %42 : vector<32x128xf32>
    %cst_12 = arith.constant 0.000000e+00 : f32
    %44 = vector.broadcast %cst_12 : f32 to vector<32x128xf32>
    %45 = arith.maximumf %43, %44 : vector<32x128xf32>
    %c0_13 = arith.constant 0 : index
    %c0_14 = arith.constant 0 : index
    %c0_15 = arith.constant 0 : index
    %46 = vector.load %arg5[%c0_13, %c0_14, %c0_15] : memref<3x8x32xf32, #tpu.memory_space<vmem>>, vector<1x8x32xf32>
    %47 = vector.shape_cast %46 : vector<1x8x32xf32> to vector<8x32xf32>
    %cst_16 = arith.constant dense<0.000000e+00> : vector<8x128xf32>
    %48 = tpu.matmul %47, %45, %cst_16 {dimension_numbers = #tpu.dot_dimension_numbers<[1], [0], [0], [1], [0, 0, 1, 1], [], []>} : vector<8x32xf32>, vector<32x128xf32>, vector<8x128xf32> -> vector<8x128xf32>
    %49 = vector.extract_strided_slice %0 {offsets = [1, 0], sizes = [1, 128], strides = [1, 1]} : vector<3x128xf32> to vector<1x128xf32>
    %50 = vector.extract_strided_slice %1 {offsets = [0, 0], sizes = [32, 1], strides = [1, 1]} : vector<128x1xf32> to vector<32x1xf32>
    %51 = vector.broadcast %50 : vector<32x1xf32> to vector<32x128xf32>
    %52 = vector.broadcast %49 : vector<1x128xf32> to vector<32x128xf32>
    %53 = arith.mulf %51, %52 : vector<32x128xf32>
    %54 = vector.extract_strided_slice %3 {offsets = [0, 0], sizes = [32, 1], strides = [1, 1]} : vector<128x1xf32> to vector<32x1xf32>
    %55 = vector.broadcast %54 : vector<32x1xf32> to vector<32x128xf32>
    %56 = arith.addf %53, %55 : vector<32x128xf32>
    %57 = vector.extract_strided_slice %2 {offsets = [0, 0], sizes = [32, 32], strides = [1, 1]} : vector<128x32xf32> to vector<32x32xf32>
    %cst_17 = arith.constant dense<0.000000e+00> : vector<32x128xf32>
    %58 = tpu.matmul %57, %43, %cst_17 {dimension_numbers = #tpu.dot_dimension_numbers<[1], [0], [0], [1], [0, 0, 1, 1], [], []>} : vector<32x32xf32>, vector<32x128xf32>, vector<32x128xf32> -> vector<32x128xf32>
    %59 = arith.addf %56, %58 : vector<32x128xf32>
    %cst_18 = arith.constant 5.000000e-01 : f32
    %60 = vector.broadcast %cst_18 : f32 to vector<32x128xf32>
    %61 = arith.mulf %60, %59 : vector<32x128xf32>
    %62 = math.tanh %61 : vector<32x128xf32>
    %cst_19 = arith.constant 5.000000e-01 : f32
    %63 = vector.broadcast %cst_19 : f32 to vector<32x128xf32>
    %64 = arith.mulf %63, %62 : vector<32x128xf32>
    %cst_20 = arith.constant 5.000000e-01 : f32
    %65 = vector.broadcast %cst_20 : f32 to vector<32x128xf32>
    %66 = arith.addf %64, %65 : vector<32x128xf32>
    %67 = vector.extract_strided_slice %1 {offsets = [32, 0], sizes = [32, 1], strides = [1, 1]} : vector<128x1xf32> to vector<32x1xf32>
    %68 = vector.broadcast %67 : vector<32x1xf32> to vector<32x128xf32>
    %69 = vector.broadcast %49 : vector<1x128xf32> to vector<32x128xf32>
    %70 = arith.mulf %68, %69 : vector<32x128xf32>
    %71 = vector.extract_strided_slice %3 {offsets = [32, 0], sizes = [32, 1], strides = [1, 1]} : vector<128x1xf32> to vector<32x1xf32>
    %72 = vector.broadcast %71 : vector<32x1xf32> to vector<32x128xf32>
    %73 = arith.addf %70, %72 : vector<32x128xf32>
    %74 = vector.extract_strided_slice %2 {offsets = [32, 0], sizes = [32, 32], strides = [1, 1]} : vector<128x32xf32> to vector<32x32xf32>
    %cst_21 = arith.constant dense<0.000000e+00> : vector<32x128xf32>
    %75 = tpu.matmul %74, %43, %cst_21 {dimension_numbers = #tpu.dot_dimension_numbers<[1], [0], [0], [1], [0, 0, 1, 1], [], []>} : vector<32x32xf32>, vector<32x128xf32>, vector<32x128xf32> -> vector<32x128xf32>
    %76 = arith.addf %73, %75 : vector<32x128xf32>
    %cst_22 = arith.constant 5.000000e-01 : f32
    %77 = vector.broadcast %cst_22 : f32 to vector<32x128xf32>
    %78 = arith.mulf %77, %76 : vector<32x128xf32>
    %79 = math.tanh %78 : vector<32x128xf32>
    %cst_23 = arith.constant 5.000000e-01 : f32
    %80 = vector.broadcast %cst_23 : f32 to vector<32x128xf32>
    %81 = arith.mulf %80, %79 : vector<32x128xf32>
    %cst_24 = arith.constant 5.000000e-01 : f32
    %82 = vector.broadcast %cst_24 : f32 to vector<32x128xf32>
    %83 = arith.addf %81, %82 : vector<32x128xf32>
    %84 = vector.extract_strided_slice %1 {offsets = [64, 0], sizes = [32, 1], strides = [1, 1]} : vector<128x1xf32> to vector<32x1xf32>
    %85 = vector.broadcast %84 : vector<32x1xf32> to vector<32x128xf32>
    %86 = vector.broadcast %49 : vector<1x128xf32> to vector<32x128xf32>
    %87 = arith.mulf %85, %86 : vector<32x128xf32>
    %88 = vector.extract_strided_slice %3 {offsets = [64, 0], sizes = [32, 1], strides = [1, 1]} : vector<128x1xf32> to vector<32x1xf32>
    %89 = vector.broadcast %88 : vector<32x1xf32> to vector<32x128xf32>
    %90 = arith.addf %87, %89 : vector<32x128xf32>
    %91 = vector.extract_strided_slice %2 {offsets = [64, 0], sizes = [32, 32], strides = [1, 1]} : vector<128x32xf32> to vector<32x32xf32>
    %cst_25 = arith.constant dense<0.000000e+00> : vector<32x128xf32>
    %92 = tpu.matmul %91, %43, %cst_25 {dimension_numbers = #tpu.dot_dimension_numbers<[1], [0], [0], [1], [0, 0, 1, 1], [], []>} : vector<32x32xf32>, vector<32x128xf32>, vector<32x128xf32> -> vector<32x128xf32>
    %93 = arith.addf %90, %92 : vector<32x128xf32>
    %94 = math.tanh %93 : vector<32x128xf32>
    %95 = vector.extract_strided_slice %1 {offsets = [96, 0], sizes = [32, 1], strides = [1, 1]} : vector<128x1xf32> to vector<32x1xf32>
    %96 = vector.broadcast %95 : vector<32x1xf32> to vector<32x128xf32>
    %97 = vector.broadcast %49 : vector<1x128xf32> to vector<32x128xf32>
    %98 = arith.mulf %96, %97 : vector<32x128xf32>
    %99 = vector.extract_strided_slice %3 {offsets = [96, 0], sizes = [32, 1], strides = [1, 1]} : vector<128x1xf32> to vector<32x1xf32>
    %100 = vector.broadcast %99 : vector<32x1xf32> to vector<32x128xf32>
    %101 = arith.addf %98, %100 : vector<32x128xf32>
    %102 = vector.extract_strided_slice %2 {offsets = [96, 0], sizes = [32, 32], strides = [1, 1]} : vector<128x32xf32> to vector<32x32xf32>
    %cst_26 = arith.constant dense<0.000000e+00> : vector<32x128xf32>
    %103 = tpu.matmul %102, %43, %cst_26 {dimension_numbers = #tpu.dot_dimension_numbers<[1], [0], [0], [1], [0, 0, 1, 1], [], []>} : vector<32x32xf32>, vector<32x128xf32>, vector<32x128xf32> -> vector<32x128xf32>
    %104 = arith.addf %101, %103 : vector<32x128xf32>
    %cst_27 = arith.constant 5.000000e-01 : f32
    %105 = vector.broadcast %cst_27 : f32 to vector<32x128xf32>
    %106 = arith.mulf %105, %104 : vector<32x128xf32>
    %107 = math.tanh %106 : vector<32x128xf32>
    %cst_28 = arith.constant 5.000000e-01 : f32
    %108 = vector.broadcast %cst_28 : f32 to vector<32x128xf32>
    %109 = arith.mulf %108, %107 : vector<32x128xf32>
    %cst_29 = arith.constant 5.000000e-01 : f32
    %110 = vector.broadcast %cst_29 : f32 to vector<32x128xf32>
    %111 = arith.addf %109, %110 : vector<32x128xf32>
    %112 = arith.mulf %83, %41 : vector<32x128xf32>
    %113 = arith.mulf %66, %94 : vector<32x128xf32>
    %114 = arith.addf %112, %113 : vector<32x128xf32>
    %115 = math.tanh %114 : vector<32x128xf32>
    %116 = arith.mulf %111, %115 : vector<32x128xf32>
    %cst_30 = arith.constant 0.000000e+00 : f32
    %117 = vector.broadcast %cst_30 : f32 to vector<32x128xf32>
    %118 = arith.maximumf %116, %117 : vector<32x128xf32>
    %c1 = arith.constant 1 : index
    %c0_31 = arith.constant 0 : index
    %c0_32 = arith.constant 0 : index
    %119 = vector.load %arg5[%c1, %c0_31, %c0_32] : memref<3x8x32xf32, #tpu.memory_space<vmem>>, vector<1x8x32xf32>
    %120 = vector.shape_cast %119 : vector<1x8x32xf32> to vector<8x32xf32>
    %cst_33 = arith.constant dense<0.000000e+00> : vector<8x128xf32>
    %121 = tpu.matmul %120, %118, %cst_33 {dimension_numbers = #tpu.dot_dimension_numbers<[1], [0], [0], [1], [0, 0, 1, 1], [], []>} : vector<8x32xf32>, vector<32x128xf32>, vector<8x128xf32> -> vector<8x128xf32>
    %122 = arith.addf %48, %121 : vector<8x128xf32>
    %123 = vector.extract_strided_slice %0 {offsets = [2, 0], sizes = [1, 128], strides = [1, 1]} : vector<3x128xf32> to vector<1x128xf32>
    %124 = vector.extract_strided_slice %1 {offsets = [0, 0], sizes = [32, 1], strides = [1, 1]} : vector<128x1xf32> to vector<32x1xf32>
    %125 = vector.broadcast %124 : vector<32x1xf32> to vector<32x128xf32>
    %126 = vector.broadcast %123 : vector<1x128xf32> to vector<32x128xf32>
    %127 = arith.mulf %125, %126 : vector<32x128xf32>
    %128 = vector.extract_strided_slice %3 {offsets = [0, 0], sizes = [32, 1], strides = [1, 1]} : vector<128x1xf32> to vector<32x1xf32>
    %129 = vector.broadcast %128 : vector<32x1xf32> to vector<32x128xf32>
    %130 = arith.addf %127, %129 : vector<32x128xf32>
    %131 = vector.extract_strided_slice %2 {offsets = [0, 0], sizes = [32, 32], strides = [1, 1]} : vector<128x32xf32> to vector<32x32xf32>
    %cst_34 = arith.constant dense<0.000000e+00> : vector<32x128xf32>
    %132 = tpu.matmul %131, %116, %cst_34 {dimension_numbers = #tpu.dot_dimension_numbers<[1], [0], [0], [1], [0, 0, 1, 1], [], []>} : vector<32x32xf32>, vector<32x128xf32>, vector<32x128xf32> -> vector<32x128xf32>
    %133 = arith.addf %130, %132 : vector<32x128xf32>
    %cst_35 = arith.constant 5.000000e-01 : f32
    %134 = vector.broadcast %cst_35 : f32 to vector<32x128xf32>
    %135 = arith.mulf %134, %133 : vector<32x128xf32>
    %136 = math.tanh %135 : vector<32x128xf32>
    %cst_36 = arith.constant 5.000000e-01 : f32
    %137 = vector.broadcast %cst_36 : f32 to vector<32x128xf32>
    %138 = arith.mulf %137, %136 : vector<32x128xf32>
    %cst_37 = arith.constant 5.000000e-01 : f32
    %139 = vector.broadcast %cst_37 : f32 to vector<32x128xf32>
    %140 = arith.addf %138, %139 : vector<32x128xf32>
    %141 = vector.extract_strided_slice %1 {offsets = [32, 0], sizes = [32, 1], strides = [1, 1]} : vector<128x1xf32> to vector<32x1xf32>
    %142 = vector.broadcast %141 : vector<32x1xf32> to vector<32x128xf32>
    %143 = vector.broadcast %123 : vector<1x128xf32> to vector<32x128xf32>
    %144 = arith.mulf %142, %143 : vector<32x128xf32>
    %145 = vector.extract_strided_slice %3 {offsets = [32, 0], sizes = [32, 1], strides = [1, 1]} : vector<128x1xf32> to vector<32x1xf32>
    %146 = vector.broadcast %145 : vector<32x1xf32> to vector<32x128xf32>
    %147 = arith.addf %144, %146 : vector<32x128xf32>
    %148 = vector.extract_strided_slice %2 {offsets = [32, 0], sizes = [32, 32], strides = [1, 1]} : vector<128x32xf32> to vector<32x32xf32>
    %cst_38 = arith.constant dense<0.000000e+00> : vector<32x128xf32>
    %149 = tpu.matmul %148, %116, %cst_38 {dimension_numbers = #tpu.dot_dimension_numbers<[1], [0], [0], [1], [0, 0, 1, 1], [], []>} : vector<32x32xf32>, vector<32x128xf32>, vector<32x128xf32> -> vector<32x128xf32>
    %150 = arith.addf %147, %149 : vector<32x128xf32>
    %cst_39 = arith.constant 5.000000e-01 : f32
    %151 = vector.broadcast %cst_39 : f32 to vector<32x128xf32>
    %152 = arith.mulf %151, %150 : vector<32x128xf32>
    %153 = math.tanh %152 : vector<32x128xf32>
    %cst_40 = arith.constant 5.000000e-01 : f32
    %154 = vector.broadcast %cst_40 : f32 to vector<32x128xf32>
    %155 = arith.mulf %154, %153 : vector<32x128xf32>
    %cst_41 = arith.constant 5.000000e-01 : f32
    %156 = vector.broadcast %cst_41 : f32 to vector<32x128xf32>
    %157 = arith.addf %155, %156 : vector<32x128xf32>
    %158 = vector.extract_strided_slice %1 {offsets = [64, 0], sizes = [32, 1], strides = [1, 1]} : vector<128x1xf32> to vector<32x1xf32>
    %159 = vector.broadcast %158 : vector<32x1xf32> to vector<32x128xf32>
    %160 = vector.broadcast %123 : vector<1x128xf32> to vector<32x128xf32>
    %161 = arith.mulf %159, %160 : vector<32x128xf32>
    %162 = vector.extract_strided_slice %3 {offsets = [64, 0], sizes = [32, 1], strides = [1, 1]} : vector<128x1xf32> to vector<32x1xf32>
    %163 = vector.broadcast %162 : vector<32x1xf32> to vector<32x128xf32>
    %164 = arith.addf %161, %163 : vector<32x128xf32>
    %165 = vector.extract_strided_slice %2 {offsets = [64, 0], sizes = [32, 32], strides = [1, 1]} : vector<128x32xf32> to vector<32x32xf32>
    %cst_42 = arith.constant dense<0.000000e+00> : vector<32x128xf32>
    %166 = tpu.matmul %165, %116, %cst_42 {dimension_numbers = #tpu.dot_dimension_numbers<[1], [0], [0], [1], [0, 0, 1, 1], [], []>} : vector<32x32xf32>, vector<32x128xf32>, vector<32x128xf32> -> vector<32x128xf32>
    %167 = arith.addf %164, %166 : vector<32x128xf32>
    %168 = math.tanh %167 : vector<32x128xf32>
    %169 = vector.extract_strided_slice %1 {offsets = [96, 0], sizes = [32, 1], strides = [1, 1]} : vector<128x1xf32> to vector<32x1xf32>
    %170 = vector.broadcast %169 : vector<32x1xf32> to vector<32x128xf32>
    %171 = vector.broadcast %123 : vector<1x128xf32> to vector<32x128xf32>
    %172 = arith.mulf %170, %171 : vector<32x128xf32>
    %173 = vector.extract_strided_slice %3 {offsets = [96, 0], sizes = [32, 1], strides = [1, 1]} : vector<128x1xf32> to vector<32x1xf32>
    %174 = vector.broadcast %173 : vector<32x1xf32> to vector<32x128xf32>
    %175 = arith.addf %172, %174 : vector<32x128xf32>
    %176 = vector.extract_strided_slice %2 {offsets = [96, 0], sizes = [32, 32], strides = [1, 1]} : vector<128x32xf32> to vector<32x32xf32>
    %cst_43 = arith.constant dense<0.000000e+00> : vector<32x128xf32>
    %177 = tpu.matmul %176, %116, %cst_43 {dimension_numbers = #tpu.dot_dimension_numbers<[1], [0], [0], [1], [0, 0, 1, 1], [], []>} : vector<32x32xf32>, vector<32x128xf32>, vector<32x128xf32> -> vector<32x128xf32>
    %178 = arith.addf %175, %177 : vector<32x128xf32>
    %cst_44 = arith.constant 5.000000e-01 : f32
    %179 = vector.broadcast %cst_44 : f32 to vector<32x128xf32>
    %180 = arith.mulf %179, %178 : vector<32x128xf32>
    %181 = math.tanh %180 : vector<32x128xf32>
    %cst_45 = arith.constant 5.000000e-01 : f32
    %182 = vector.broadcast %cst_45 : f32 to vector<32x128xf32>
    %183 = arith.mulf %182, %181 : vector<32x128xf32>
    %cst_46 = arith.constant 5.000000e-01 : f32
    %184 = vector.broadcast %cst_46 : f32 to vector<32x128xf32>
    %185 = arith.addf %183, %184 : vector<32x128xf32>
    %186 = arith.mulf %157, %114 : vector<32x128xf32>
    %187 = arith.mulf %140, %168 : vector<32x128xf32>
    %188 = arith.addf %186, %187 : vector<32x128xf32>
    %189 = math.tanh %188 : vector<32x128xf32>
    %190 = arith.mulf %185, %189 : vector<32x128xf32>
    %cst_47 = arith.constant 0.000000e+00 : f32
    %191 = vector.broadcast %cst_47 : f32 to vector<32x128xf32>
    %192 = arith.maximumf %190, %191 : vector<32x128xf32>
    %c2 = arith.constant 2 : index
    %c0_48 = arith.constant 0 : index
    %c0_49 = arith.constant 0 : index
    %193 = vector.load %arg5[%c2, %c0_48, %c0_49] : memref<3x8x32xf32, #tpu.memory_space<vmem>>, vector<1x8x32xf32>
    %194 = vector.shape_cast %193 : vector<1x8x32xf32> to vector<8x32xf32>
    %cst_50 = arith.constant dense<0.000000e+00> : vector<8x128xf32>
    %195 = tpu.matmul %194, %192, %cst_50 {dimension_numbers = #tpu.dot_dimension_numbers<[1], [0], [0], [1], [0, 0, 1, 1], [], []>} : vector<8x32xf32>, vector<32x128xf32>, vector<8x128xf32> -> vector<8x128xf32>
    %196 = arith.addf %122, %195 : vector<8x128xf32>
    %c0_51 = arith.constant 0 : index
    %c0_52 = arith.constant 0 : index
    %197 = vector.load %arg6[%c0_51, %c0_52] : memref<8x1xf32, #tpu.memory_space<vmem>>, vector<8x1xf32>
    %198 = vector.broadcast %197 : vector<8x1xf32> to vector<8x128xf32>
    %199 = arith.addf %196, %198 : vector<8x128xf32>
    %cst_53 = arith.constant 0.000000e+00 : f32
    %200 = vector.broadcast %cst_53 : f32 to vector<8x128xf32>
    %201 = arith.maximumf %199, %200 : vector<8x128xf32>
    %c0_54 = arith.constant 0 : index
    %c0_55 = arith.constant 0 : index
    %202 = vector.load %arg7[%c0_54, %c0_55] : memref<8x1xf32, #tpu.memory_space<vmem>>, vector<8x1xf32>
    %203 = vector.broadcast %202 : vector<8x1xf32> to vector<8x128xf32>
    %204 = arith.mulf %201, %203 : vector<8x128xf32>
    %cst_56 = arith.constant dense<0.000000e+00> : vector<128xf32>
    %205 = vector.multi_reduction <add>, %204, %cst_56 [0] : vector<8x128xf32> to vector<128xf32>
    %206 = vector.shape_cast %205 : vector<128xf32> to vector<1x128xf32>
    %c0_57 = arith.constant 0 : index
    %c0_58 = arith.constant 0 : index
    %207 = vector.load %arg8[%c0_57, %c0_58] : memref<1x1xf32, #tpu.memory_space<vmem>>, vector<1x1xf32>
    %208 = vector.broadcast %207 : vector<1x1xf32> to vector<1x128xf32>
    %209 = arith.addf %206, %208 : vector<1x128xf32>
    %c0_59 = arith.constant 0 : index
    %c0_60 = arith.constant 0 : index
    %210 = vector.load %arg9[%c0_59, %c0_60] : memref<1x128xf32, #tpu.memory_space<vmem>>, vector<1x128xf32>
    tpu.vector_store %arg9[%c0_59, %c0_60], %209 {strides = array<i32>} : memref<1x128xf32, #tpu.memory_space<vmem>>, vector<1x128xf32>,
    return
  }
  func.func @transform_0(%arg0: i32) -> (i32, i32) {
    %c0_i32 = arith.constant 0 : i32
    %c0_i32_0 = arith.constant 0 : i32
    return %c0_i32, %arg0 : i32, i32
  }
  func.func @transform_1(%arg0: i32) -> (i32, i32) {
    %c0_i32 = arith.constant 0 : i32
    %c0_i32_0 = arith.constant 0 : i32
    %c0_i32_1 = arith.constant 0 : i32
    return %c0_i32, %c0_i32_0 : i32, i32
  }
  func.func @transform_2(%arg0: i32) -> (i32, i32) {
    %c0_i32 = arith.constant 0 : i32
    %c0_i32_0 = arith.constant 0 : i32
    %c0_i32_1 = arith.constant 0 : i32
    return %c0_i32, %c0_i32_0 : i32, i32
  }
  func.func @transform_3(%arg0: i32) -> (i32, i32) {
    %c0_i32 = arith.constant 0 : i32
    %c0_i32_0 = arith.constant 0 : i32
    %c0_i32_1 = arith.constant 0 : i32
    return %c0_i32, %c0_i32_0 : i32, i32
  }
  func.func @transform_4(%arg0: i32) -> (i32, i32, i32) {
    %c0_i32 = arith.constant 0 : i32
    %c0_i32_0 = arith.constant 0 : i32
    %c0_i32_1 = arith.constant 0 : i32
    %c0_i32_2 = arith.constant 0 : i32
    return %c0_i32, %c0_i32_0, %c0_i32_1 : i32, i32, i32
  }
  func.func @transform_5(%arg0: i32) -> (i32, i32) {
    %c0_i32 = arith.constant 0 : i32
    %c0_i32_0 = arith.constant 0 : i32
    %c0_i32_1 = arith.constant 0 : i32
    return %c0_i32, %c0_i32_0 : i32, i32
  }
  func.func @transform_6(%arg0: i32) -> (i32, i32) {
    %c0_i32 = arith.constant 0 : i32
    %c0_i32_0 = arith.constant 0 : i32
    %c0_i32_1 = arith.constant 0 : i32
    return %c0_i32, %c0_i32_0 : i32, i32
  }
  func.func @transform_7(%arg0: i32) -> (i32, i32) {
    %c0_i32 = arith.constant 0 : i32
    %c0_i32_0 = arith.constant 0 : i32
    %c0_i32_1 = arith.constant 0 : i32
    return %c0_i32, %c0_i32_0 : i32, i32
  }
  func.func @transform_8(%arg0: i32) -> (i32, i32) {
    %c0_i32 = arith.constant 0 : i32
    %c0_i32_0 = arith.constant 0 : i32
    return %c0_i32, %arg0 : i32, i32
  }
}

</mosaic_0001>

<llo_original>
// kernel: tpu_custom_call.1
$region0: #{tpu_custom_call.1}
  #allocation0 [shape = 'u32[]', space=smem, size = 0x4, offset = 0x4, fixed_abs, tag = 'smem constant byte address 0x4 - core index']
  #allocation1 [shape = 'u32[72,128]{1,0:T(1,128)}', space=vmem, size = 0x9000, scoped, tag = 'internal scratch']
  #allocation2 [shape = 'f32[1,1]{1,0:T(1,128)S(1)}', space=vmem, size = 0x200, scoped, tag = 'scoped memory for tpu_custom_call.1']
  %s0 = inlined_call_operand.vmem [shape: f32[3,128], index: 0, kind: input, shape index: {}]
  %s1 = inlined_call_operand.vmem [shape: f32[128,1], index: 1, kind: input, shape index: {}]
  %s2 = inlined_call_operand.vmem [shape: f32[128,32], index: 2, kind: input, shape index: {}]
  %s3 = inlined_call_operand.vmem [shape: f32[128,1], index: 3, kind: input, shape index: {}]
  %s4 = inlined_call_operand.vmem [shape: f32[3,8,32], index: 4, kind: input, shape index: {}]
  %s5 = inlined_call_operand.vmem [shape: f32[8,1], index: 5, kind: input, shape index: {}]
  %s6 = inlined_call_operand.vmem [shape: f32[8,1], index: 6, kind: input, shape index: {}]
  %s7 = inlined_call_operand.<no memory space> [shape: f32[1,1], index: 7, kind: input, shape index: {}]
  %s8 = inlined_call_operand.hbm [shape: f32[1,128], index: 8, kind: output, shape index: {}]
  %s9 = sld [smem:[#allocation0]]
  $region42: #{tpu_custom_call.1} parent=0
    _
  %s11 = ssub.s32 1, %s9
  %s12 = scalar_select 0, %s11, %s9
  %v13 = vstv %s7
  %14 = vst [vmem:[#allocation2] sm:$0x1] %v13
  $region1: #{tpu_custom_call.1} parent=0
    #allocation3 [shape = 'u8[512]{0}', space=vmem, size = 0x400, scoped, tag = 'output window, operand 0, single buffered']
    #allocation4 [shape = 's32[1]{0}', space=sflag, size = 0x4, scoped, tag = 'scoped memory for tpu_custom_call.1']
    %15 = vsyncpa [#allocation4], 0
    // Predicated region
    $region2: #{tpu_custom_call.1} parent=1 // pred_check
      _
    $region3: #{tpu_custom_call.1} parent=1 // pred_check_branch
      %17 = sbr.rel (0) target = $region5
    $region4: #{tpu_custom_call.1} parent=1 // pred_region
      _
    $region5: #{tpu_custom_call.1} parent=1 // pred_fallthru
      _
    // Predicated region
    $region6: #{tpu_custom_call.1} parent=1 // pred_check
      _
    $region7: #{tpu_custom_call.1} parent=1 // pred_check_branch
      %19 = sbr.rel (0) target = $region9
    $region8: #{tpu_custom_call.1} parent=1 // pred_region
      _
    $region9: #{tpu_custom_call.1} parent=1 // pred_fallthru
      _
    // Predicated region
    $region10: #{tpu_custom_call.1} parent=1 // pred_check
      _
    $region11: #{tpu_custom_call.1} parent=1 // pred_check_branch
      %21 = sbr.rel (0) target = $region13
    $region12: #{tpu_custom_call.1} parent=1 // pred_region
      _
    $region13: #{tpu_custom_call.1} parent=1 // pred_fallthru
      _
    // Predicated region
    $region14: #{tpu_custom_call.1} parent=1 // pred_check
      _
    $region15: #{tpu_custom_call.1} parent=1 // pred_check_branch
      %23 = sbr.rel (0) target = $region17
    $region16: #{tpu_custom_call.1} parent=1 // pred_region
      _
    $region17: #{tpu_custom_call.1} parent=1 // pred_fallthru
      _
    // Predicated region
    $region18: #{tpu_custom_call.1} parent=1 // pred_check
      _
    $region19: #{tpu_custom_call.1} parent=1 // pred_check_branch
      %25 = sbr.rel (0) target = $region21
    $region20: #{tpu_custom_call.1} parent=1 // pred_region
      _
    $region21: #{tpu_custom_call.1} parent=1 // pred_fallthru
      _
    // Predicated region
    $region22: #{tpu_custom_call.1} parent=1 // pred_check
      _
    $region23: #{tpu_custom_call.1} parent=1 // pred_check_branch
      %27 = sbr.rel (0) target = $region25
    $region24: #{tpu_custom_call.1} parent=1 // pred_region
      _
    $region25: #{tpu_custom_call.1} parent=1 // pred_fallthru
      _
    // Predicated region
    $region26: #{tpu_custom_call.1} parent=1 // pred_check
      _
    $region27: #{tpu_custom_call.1} parent=1 // pred_check_branch
      %29 = sbr.rel (0) target = $region29
    $region28: #{tpu_custom_call.1} parent=1 // pred_region
      _
    $region29: #{tpu_custom_call.1} parent=1 // pred_fallthru
      _
    // Predicated region
    $region30: #{tpu_custom_call.1} parent=1 // pred_check
      _
    $region31: #{tpu_custom_call.1} parent=1 // pred_check_branch
      %31 = sbr.rel (0) target = $region33
    $region32: #{tpu_custom_call.1} parent=1 // pred_region
      _
    $region33: #{tpu_custom_call.1} parent=1 // pred_fallthru
      _
    %v32 = vld [vmem:[%s0] sm:$0x7]
    %v33 = vld [vmem:[%s1] sm:$0xff]
    %v34 = vld [vmem:[%s1 + $0x8] sm:$0xff]
    %v35 = vld [vmem:[%s1 + $0x10] sm:$0xff]
    %v36 = vld [vmem:[%s1 + $0x18] sm:$0xff]
    %v37 = vld [vmem:[%s1 + $0x20] sm:$0xff]
    %v38 = vld [vmem:[%s1 + $0x28] sm:$0xff]
    %v39 = vld [vmem:[%s1 + $0x30] sm:$0xff]
    %v40 = vld [vmem:[%s1 + $0x38] sm:$0xff]
    %v41 = vld [vmem:[%s1 + $0x40] sm:$0xff]
    %v42 = vld [vmem:[%s1 + $0x48] sm:$0xff]
    %v43 = vld [vmem:[%s1 + $0x50] sm:$0xff]
    %v44 = vld [vmem:[%s1 + $0x58] sm:$0xff]
    %v45 = vld [vmem:[%s1 + $0x60] sm:$0xff]
    %v46 = vld [vmem:[%s1 + $0x68] sm:$0xff]
    %v47 = vld [vmem:[%s1 + $0x70] sm:$0xff]
    %v48 = vld [vmem:[%s1 + $0x78] sm:$0xff]
    %v49 = vld [vmem:[%s2] sm:$0xff]
    %v50 = vld [vmem:[%s2 + $0x8] sm:$0xff]
    %v51 = vld [vmem:[%s2 + $0x10] sm:$0xff]
    %v52 = vld [vmem:[%s2 + $0x18] sm:$0xff]
    %v53 = vld [vmem:[%s2 + $0x20] sm:$0xff]
    %v54 = vld [vmem:[%s2 + $0x28] sm:$0xff]
    %v55 = vld [vmem:[%s2 + $0x30] sm:$0xff]
    %v56 = vld [vmem:[%s2 + $0x38] sm:$0xff]
    %v57 = vld [vmem:[%s2 + $0x40] sm:$0xff]
    %v58 = vld [vmem:[%s2 + $0x48] sm:$0xff]
    %v59 = vld [vmem:[%s2 + $0x50] sm:$0xff]
    %v60 = vld [vmem:[%s2 + $0x58] sm:$0xff]
    %v61 = vld [vmem:[%s2 + $0x60] sm:$0xff]
    %v62 = vld [vmem:[%s2 + $0x68] sm:$0xff]
    %v63 = vld [vmem:[%s2 + $0x70] sm:$0xff]
    %v64 = vld [vmem:[%s2 + $0x78] sm:$0xff]
    %v65 = vld [vmem:[%s3] sm:$0xff]
    %v66 = vld [vmem:[%s3 + $0x8] sm:$0xff]
    %v67 = vld [vmem:[%s3 + $0x10] sm:$0xff]
    %v68 = vld [vmem:[%s3 + $0x18] sm:$0xff]
    %v69 = vld [vmem:[%s3 + $0x20] sm:$0xff]
    %v70 = vld [vmem:[%s3 + $0x28] sm:$0xff]
    %v71 = vld [vmem:[%s3 + $0x30] sm:$0xff]
    %v72 = vld [vmem:[%s3 + $0x38] sm:$0xff]
    %v73 = vld [vmem:[%s3 + $0x40] sm:$0xff]
    %v74 = vld [vmem:[%s3 + $0x48] sm:$0xff]
    %v75 = vld [vmem:[%s3 + $0x50] sm:$0xff]
    %v76 = vld [vmem:[%s3 + $0x58] sm:$0xff]
    %v77 = vld [vmem:[%s3 + $0x60] sm:$0xff]
    %v78 = vld [vmem:[%s3 + $0x68] sm:$0xff]
    %v79 = vld [vmem:[%s3 + $0x70] sm:$0xff]
    %v80 = vld [vmem:[%s3 + $0x78] sm:$0xff]
    %82 = vset.pattern.permute.xlu0 0
    %83 = vperm.xlu0 %82, %v33
    %v84 = vpop.permute.xlu0 %83
    %87 = vset.pattern.permute.xlu0 0
    %88 = vperm.xlu0 %87, %v34
    %v89 = vpop.permute.xlu0 %88
    %92 = vset.pattern.permute.xlu0 0
    %93 = vperm.xlu0 %92, %v35
    %v94 = vpop.permute.xlu0 %93
    %97 = vset.pattern.permute.xlu0 0
    %98 = vperm.xlu0 %97, %v36
    %v99 = vpop.permute.xlu0 %98
    %v101 = vperm.slane %v32, 0
    %v102 = vmul.f32 %v84, %v101
    %v103 = vmul.f32 %v89, %v101
    %v104 = vmul.f32 %v94, %v101
    %v105 = vmul.f32 %v99, %v101
    %107 = vset.pattern.permute.xlu0 0
    %108 = vperm.xlu0 %107, %v65
    %v109 = vpop.permute.xlu0 %108
    %112 = vset.pattern.permute.xlu0 0
    %113 = vperm.xlu0 %112, %v66
    %v114 = vpop.permute.xlu0 %113
    %117 = vset.pattern.permute.xlu0 0
    %118 = vperm.xlu0 %117, %v67
    %v119 = vpop.permute.xlu0 %118
    %122 = vset.pattern.permute.xlu0 0
    %123 = vperm.xlu0 %122, %v68
    %v124 = vpop.permute.xlu0 %123
    %v126 = vadd.f32 %v102, %v109
    %v127 = vadd.f32 %v103, %v114
    %v128 = vadd.f32 %v104, %v119
    %v129 = vadd.f32 %v105, %v124
    %v130 = vmul.f32 %v126, 0.5
    %v131 = vmul.f32 %v127, 0.5
    %v132 = vmul.f32 %v128, 0.5
    %v133 = vmul.f32 %v129, 0.5
    %v134 = vtanh.pop %v130
    %v135 = vtanh.pop %v131
    %v136 = vtanh.pop %v132
    %v137 = vtanh.pop %v133
    %v138 = vmul.f32 %v134, 0.5
    %v139 = vmul.f32 %v135, 0.5
    %v140 = vmul.f32 %v136, 0.5
    %v141 = vmul.f32 %v137, 0.5
    %v142 = vadd.f32 %v138, 0.5
    %v143 = vadd.f32 %v139, 0.5
    %v144 = vadd.f32 %v140, 0.5
    %v145 = vadd.f32 %v141, 0.5
    %147 = vset.pattern.permute.xlu0 0
    %148 = vperm.xlu0 %147, %v41
    %v149 = vpop.permute.xlu0 %148
    %152 = vset.pattern.permute.xlu0 0
    %153 = vperm.xlu0 %152, %v42
    %v154 = vpop.permute.xlu0 %153
    %157 = vset.pattern.permute.xlu0 0
    %158 = vperm.xlu0 %157, %v43
    %v159 = vpop.permute.xlu0 %158
    %162 = vset.pattern.permute.xlu0 0
    %163 = vperm.xlu0 %162, %v44
    %v164 = vpop.permute.xlu0 %163
    %v166 = vmul.f32 %v149, %v101
    %v167 = vmul.f32 %v154, %v101
    %v168 = vmul.f32 %v159, %v101
    %v169 = vmul.f32 %v164, %v101
    %171 = vset.pattern.permute.xlu0 0
    %172 = vperm.xlu0 %171, %v73
    %v173 = vpop.permute.xlu0 %172
    %176 = vset.pattern.permute.xlu0 0
    %177 = vperm.xlu0 %176, %v74
    %v178 = vpop.permute.xlu0 %177
    %181 = vset.pattern.permute.xlu0 0
    %182 = vperm.xlu0 %181, %v75
    %v183 = vpop.permute.xlu0 %182
    %186 = vset.pattern.permute.xlu0 0
    %187 = vperm.xlu0 %186, %v76
    %v188 = vpop.permute.xlu0 %187
    %v190 = vadd.f32 %v166, %v173
    %v191 = vadd.f32 %v167, %v178
    %v192 = vadd.f32 %v168, %v183
    %v193 = vadd.f32 %v169, %v188
    %v194 = vtanh.pop %v190
    %v195 = vtanh.pop %v191
    %v196 = vtanh.pop %v192
    %v197 = vtanh.pop %v193
    %199 = vset.pattern.permute.xlu0 0
    %200 = vperm.xlu0 %199, %v45
    %v201 = vpop.permute.xlu0 %200
    %204 = vset.pattern.permute.xlu0 0
    %205 = vperm.xlu0 %204, %v46
    %v206 = vpop.permute.xlu0 %205
    %209 = vset.pattern.permute.xlu0 0
    %210 = vperm.xlu0 %209, %v47
    %v211 = vpop.permute.xlu0 %210
    %214 = vset.pattern.permute.xlu0 0
    %215 = vperm.xlu0 %214, %v48
    %v216 = vpop.permute.xlu0 %215
    %v218 = vmul.f32 %v201, %v101
    %v219 = vmul.f32 %v206, %v101
    %v220 = vmul.f32 %v211, %v101
    %v221 = vmul.f32 %v216, %v101
    %223 = vset.pattern.permute.xlu0 0
    %224 = vperm.xlu0 %223, %v77
    %v225 = vpop.permute.xlu0 %224
    %228 = vset.pattern.permute.xlu0 0
    %229 = vperm.xlu0 %228, %v78
    %v230 = vpop.permute.xlu0 %229
    %233 = vset.pattern.permute.xlu0 0
    %234 = vperm.xlu0 %233, %v79
    %v235 = vpop.permute.xlu0 %234
    %238 = vset.pattern.permute.xlu0 0
    %239 = vperm.xlu0 %238, %v80
    %v240 = vpop.permute.xlu0 %239
    %v242 = vadd.f32 %v218, %v225
    %v243 = vadd.f32 %v219, %v230
    %v244 = vadd.f32 %v220, %v235
    %v245 = vadd.f32 %v221, %v240
    %v246 = vmul.f32 %v242, 0.5
    %v247 = vmul.f32 %v243, 0.5
    %v248 = vmul.f32 %v244, 0.5
    %v249 = vmul.f32 %v245, 0.5
    %v250 = vtanh.pop %v246
    %v251 = vtanh.pop %v247
    %v252 = vtanh.pop %v248
    %v253 = vtanh.pop %v249
    %v254 = vmul.f32 %v250, 0.5
    %v255 = vmul.f32 %v251, 0.5
    %v256 = vmul.f32 %v252, 0.5
    %v257 = vmul.f32 %v253, 0.5
    %v258 = vadd.f32 %v254, 0.5
    %v259 = vadd.f32 %v255, 0.5
    %v260 = vadd.f32 %v256, 0.5
    %v261 = vadd.f32 %v257, 0.5
    %v262 = vmul.f32 %v142, %v194
    %v263 = vmul.f32 %v143, %v195
    %v264 = vmul.f32 %v144, %v196
    %v265 = vmul.f32 %v145, %v197
    %v266 = vtanh.pop %v262
    %v267 = vtanh.pop %v263
    %v268 = vtanh.pop %v264
    %v269 = vtanh.pop %v265
    %v270 = vmul.f32 %v258, %v266
    %v271 = vmul.f32 %v259, %v267
    %v272 = vmul.f32 %v260, %v268
    %v273 = vmul.f32 %v261, %v269
    %v274 = vmax.f32 %v270, 0.0
    %v275 = vmax.f32 %v271, 0.0
    %v276 = vmax.f32 %v272, 0.0
    %v277 = vmax.f32 %v273, 0.0
    %v278 = vld [vmem:[%s4] sm:$0xff]
    %v279 = vperm.slane %v32, 1
    %v280 = vmul.f32 %v84, %v279
    %v281 = vmul.f32 %v89, %v279
    %v282 = vmul.f32 %v94, %v279
    %v283 = vmul.f32 %v99, %v279
    %v284 = vadd.f32 %v280, %v109
    %v285 = vadd.f32 %v281, %v114
    %v286 = vadd.f32 %v282, %v119
    %v287 = vadd.f32 %v283, %v124
    %vm288 = vcmask 261120
    %v290 = vsel %vm288, %v49, 0
    %v293 = vsel %vm288, %v50, 0
    %v296 = vsel %vm288, %v51, 0
    %v299 = vsel %vm288, %v52, 0
    %301 = vmatpush.msra.mxu0 0.0
    %302 = vmatpush.msra.mxu0 0.0
    %303 = vmatpush.msra.mxu0 0.0
    %304 = vmatpush.msra.mxu0 0.0
    %305 = vmatpush.msra.mxu0 0.0
    %306 = vmatpush.msra.mxu0 0.0
    %307 = vmatpush.msra.mxu0 0.0
    %308 = vmatpush.msra.mxu0 0.0
    %309 = vmatpush.msra.mxu0 0.0
    %310 = vmatpush.msra.mxu0 0.0
    %311 = vmatpush.msra.mxu0 0.0
    %312 = vmatpush.msra.mxu0 0.0
    %313 = vmatpush.msra.mxu0 %v273
    %314 = vmatpush.msra.mxu0 %v272
    %315 = vmatpush.msra.mxu0 %v271
    %316 = vmatpush.msra.mxu0 %v270
    %317 = vmatmul.f32.gmra.mxu0 %v290
    %v318 = vpop.f32.mrf.mxu0
    %v319 = vadd.f32 0.0, %v318
    %320 = vmatmul.f32.gmra.mxu0 %v293
    %v321 = vpop.f32.mrf.mxu0
    %v322 = vadd.f32 0.0, %v321
    %323 = vmatmul.f32.gmra.mxu0 %v296
    %v324 = vpop.f32.mrf.mxu0
    %v325 = vadd.f32 0.0, %v324
    %326 = vmatmul.f32.gmra.mxu0 %v299
    %v327 = vpop.f32.mrf.mxu0
    %v328 = vadd.f32 0.0, %v327
    %329 = vdwg.mxu0
    %v330 = vadd.f32 %v284, %v319
    %v331 = vadd.f32 %v285, %v322
    %v332 = vadd.f32 %v286, %v325
    %v333 = vadd.f32 %v287, %v328
    %v334 = vmul.f32 %v330, 0.5
    %v335 = vmul.f32 %v331, 0.5
    %v336 = vmul.f32 %v332, 0.5
    %v337 = vmul.f32 %v333, 0.5
    %v338 = vtanh.pop %v334
    %v339 = vtanh.pop %v335
    %v340 = vtanh.pop %v336
    %v341 = vtanh.pop %v337
    %v342 = vmul.f32 %v338, 0.5
    %v343 = vmul.f32 %v339, 0.5
    %v344 = vmul.f32 %v340, 0.5
    %v345 = vmul.f32 %v341, 0.5
    %v346 = vadd.f32 %v342, 0.5
    %v347 = vadd.f32 %v343, 0.5
    %v348 = vadd.f32 %v344, 0.5
    %v349 = vadd.f32 %v345, 0.5
    %351 = vset.pattern.permute.xlu0 0
    %352 = vperm.xlu0 %351, %v37
    %v353 = vpop.permute.xlu0 %352
    %356 = vset.pattern.permute.xlu0 0
    %357 = vperm.xlu0 %356, %v38
    %v358 = vpop.permute.xlu0 %357
    %361 = vset.pattern.permute.xlu0 0
    %362 = vperm.xlu0 %361, %v39
    %v363 = vpop.permute.xlu0 %362
    %366 = vset.pattern.permute.xlu0 0
    %367 = vperm.xlu0 %366, %v40
    %v368 = vpop.permute.xlu0 %367
    %v370 = vmul.f32 %v353, %v279
    %v371 = vmul.f32 %v358, %v279
    %v372 = vmul.f32 %v363, %v279
    %v373 = vmul.f32 %v368, %v279
    %375 = vset.pattern.permute.xlu0 0
    %376 = vperm.xlu0 %375, %v69
    %v377 = vpop.permute.xlu0 %376
    %380 = vset.pattern.permute.xlu0 0
    %381 = vperm.xlu0 %380, %v70
    %v382 = vpop.permute.xlu0 %381
    %385 = vset.pattern.permute.xlu0 0
    %386 = vperm.xlu0 %385, %v71
    %v387 = vpop.permute.xlu0 %386
    %390 = vset.pattern.permute.xlu0 0
    %391 = vperm.xlu0 %390, %v72
    %v392 = vpop.permute.xlu0 %391
    %v394 = vadd.f32 %v370, %v377
    %v395 = vadd.f32 %v371, %v382
    %v396 = vadd.f32 %v372, %v387
    %v397 = vadd.f32 %v373, %v392
    %v399 = vsel %vm288, %v53, 0
    %v402 = vsel %vm288, %v54, 0
    %v405 = vsel %vm288, %v55, 0
    %v408 = vsel %vm288, %v56, 0
    %410 = vmatpush.msra.mxu0 0.0
    %411 = vmatpush.msra.mxu0 0.0
    %412 = vmatpush.msra.mxu0 0.0
    %413 = vmatpush.msra.mxu0 0.0
    %414 = vmatpush.msra.mxu0 0.0
    %415 = vmatpush.msra.mxu0 0.0
    %416 = vmatpush.msra.mxu0 0.0
    %417 = vmatpush.msra.mxu0 0.0
    %418 = vmatpush.msra.mxu0 0.0
    %419 = vmatpush.msra.mxu0 0.0
    %420 = vmatpush.msra.mxu0 0.0
    %421 = vmatpush.msra.mxu0 0.0
    %422 = vmatpush.msra.mxu0 %v273
    %423 = vmatpush.msra.mxu0 %v272
    %424 = vmatpush.msra.mxu0 %v271
    %425 = vmatpush.msra.mxu0 %v270
    %426 = vmatmul.f32.gmra.mxu0 %v399
    %v427 = vpop.f32.mrf.mxu0
    %v428 = vadd.f32 0.0, %v427
    %429 = vmatmul.f32.gmra.mxu0 %v402
    %v430 = vpop.f32.mrf.mxu0
    %v431 = vadd.f32 0.0, %v430
    %432 = vmatmul.f32.gmra.mxu0 %v405
    %v433 = vpop.f32.mrf.mxu0
    %v434 = vadd.f32 0.0, %v433
    %435 = vmatmul.f32.gmra.mxu0 %v408
    %v436 = vpop.f32.mrf.mxu0
    %v437 = vadd.f32 0.0, %v436
    %438 = vdwg.mxu0
    %v439 = vadd.f32 %v394, %v428
    %v440 = vadd.f32 %v395, %v431
    %v441 = vadd.f32 %v396, %v434
    %v442 = vadd.f32 %v397, %v437
    %v443 = vmul.f32 %v439, 0.5
    %v444 = vmul.f32 %v440, 0.5
    %v445 = vmul.f32 %v441, 0.5
    %v446 = vmul.f32 %v442, 0.5
    %v447 = vtanh.pop %v443
    %v448 = vtanh.pop %v444
    %v449 = vtanh.pop %v445
    %v450 = vtanh.pop %v446
    %v451 = vmul.f32 %v447, 0.5
    %v452 = vmul.f32 %v448, 0.5
    %v453 = vmul.f32 %v449, 0.5
    %v454 = vmul.f32 %v450, 0.5
    %v455 = vadd.f32 %v451, 0.5
    %v456 = vadd.f32 %v452, 0.5
    %v457 = vadd.f32 %v453, 0.5
    %v458 = vadd.f32 %v454, 0.5
    %v459 = vmul.f32 %v149, %v279
    %v460 = vmul.f32 %v154, %v279
    %v461 = vmul.f32 %v159, %v279
    %v462 = vmul.f32 %v164, %v279
    %v463 = vadd.f32 %v459, %v173
    %v464 = vadd.f32 %v460, %v178
    %v465 = vadd.f32 %v461, %v183
    %v466 = vadd.f32 %v462, %v188
    %v468 = vsel %vm288, %v57, 0
    %v471 = vsel %vm288, %v58, 0
    %v474 = vsel %vm288, %v59, 0
    %v477 = vsel %vm288, %v60, 0
    %479 = vmatpush.msra.mxu0 0.0
    %480 = vmatpush.msra.mxu0 0.0
    %481 = vmatpush.msra.mxu0 0.0
    %482 = vmatpush.msra.mxu0 0.0
    %483 = vmatpush.msra.mxu0 0.0
    %484 = vmatpush.msra.mxu0 0.0
    %485 = vmatpush.msra.mxu0 0.0
    %486 = vmatpush.msra.mxu0 0.0
    %487 = vmatpush.msra.mxu0 0.0
    %488 = vmatpush.msra.mxu0 0.0
    %489 = vmatpush.msra.mxu0 0.0
    %490 = vmatpush.msra.mxu0 0.0
    %491 = vmatpush.msra.mxu0 %v273
    %492 = vmatpush.msra.mxu0 %v272
    %493 = vmatpush.msra.mxu0 %v271
    %494 = vmatpush.msra.mxu0 %v270
    %495 = vmatmul.f32.gmra.mxu0 %v468
    %v496 = vpop.f32.mrf.mxu0
    %v497 = vadd.f32 0.0, %v496
    %498 = vmatmul.f32.gmra.mxu0 %v471
    %v499 = vpop.f32.mrf.mxu0
    %v500 = vadd.f32 0.0, %v499
    %501 = vmatmul.f32.gmra.mxu0 %v474
    %v502 = vpop.f32.mrf.mxu0
    %v503 = vadd.f32 0.0, %v502
    %504 = vmatmul.f32.gmra.mxu0 %v477
    %v505 = vpop.f32.mrf.mxu0
    %v506 = vadd.f32 0.0, %v505
    %507 = vdwg.mxu0
    %v508 = vadd.f32 %v463, %v497
    %v509 = vadd.f32 %v464, %v500
    %v510 = vadd.f32 %v465, %v503
    %v511 = vadd.f32 %v466, %v506
    %v512 = vtanh.pop %v508
    %v513 = vtanh.pop %v509
    %v514 = vtanh.pop %v510
    %v515 = vtanh.pop %v511
    %v516 = vmul.f32 %v201, %v279
    %v517 = vmul.f32 %v206, %v279
    %v518 = vmul.f32 %v211, %v279
    %v519 = vmul.f32 %v216, %v279
    %v520 = vadd.f32 %v516, %v225
    %v521 = vadd.f32 %v517, %v230
    %v522 = vadd.f32 %v518, %v235
    %v523 = vadd.f32 %v519, %v240
    %v525 = vsel %vm288, %v61, 0
    %v528 = vsel %vm288, %v62, 0
    %v531 = vsel %vm288, %v63, 0
    %v534 = vsel %vm288, %v64, 0
    %536 = vmatpush.msra.mxu0 0.0
    %537 = vmatpush.msra.mxu0 0.0
    %538 = vmatpush.msra.mxu0 0.0
    %539 = vmatpush.msra.mxu0 0.0
    %540 = vmatpush.msra.mxu0 0.0
    %541 = vmatpush.msra.mxu0 0.0
    %542 = vmatpush.msra.mxu0 0.0
    %543 = vmatpush.msra.mxu0 0.0
    %544 = vmatpush.msra.mxu0 0.0
    %545 = vmatpush.msra.mxu0 0.0
    %546 = vmatpush.msra.mxu0 0.0
    %547 = vmatpush.msra.mxu0 0.0
    %548 = vmatpush.msra.mxu0 %v273
    %549 = vmatpush.msra.mxu0 %v272
    %550 = vmatpush.msra.mxu0 %v271
    %551 = vmatpush.msra.mxu0 %v270
    %552 = vmatmul.f32.gmra.mxu0 %v525
    %v553 = vpop.f32.mrf.mxu0
    %v554 = vadd.f32 0.0, %v553
    %555 = vmatmul.f32.gmra.mxu0 %v528
    %v556 = vpop.f32.mrf.mxu0
    %v557 = vadd.f32 0.0, %v556
    %558 = vmatmul.f32.gmra.mxu0 %v531
    %v559 = vpop.f32.mrf.mxu0
    %v560 = vadd.f32 0.0, %v559
    %561 = vmatmul.f32.gmra.mxu0 %v534
    %v562 = vpop.f32.mrf.mxu0
    %v563 = vadd.f32 0.0, %v562
    %564 = vdwg.mxu0
    %v565 = vadd.f32 %v520, %v554
    %v566 = vadd.f32 %v521, %v557
    %v567 = vadd.f32 %v522, %v560
    %v568 = vadd.f32 %v523, %v563
    %v569 = vmul.f32 %v565, 0.5
    %v570 = vmul.f32 %v566, 0.5
    %v571 = vmul.f32 %v567, 0.5
    %v572 = vmul.f32 %v568, 0.5
    %v573 = vtanh.pop %v569
    %v574 = vtanh.pop %v570
    %v575 = vtanh.pop %v571
    %v576 = vtanh.pop %v572
    %v577 = vmul.f32 %v573, 0.5
    %v578 = vmul.f32 %v574, 0.5
    %v579 = vmul.f32 %v575, 0.5
    %v580 = vmul.f32 %v576, 0.5
    %v581 = vadd.f32 %v577, 0.5
    %v582 = vadd.f32 %v578, 0.5
    %v583 = vadd.f32 %v579, 0.5
    %v584 = vadd.f32 %v580, 0.5
    %v585 = vmul.f32 %v455, %v262
    %v586 = vmul.f32 %v456, %v263
    %v587 = vmul.f32 %v457, %v264
    %v588 = vmul.f32 %v458, %v265
    %v589 = vmul.f32 %v346, %v512
    %v590 = vmul.f32 %v347, %v513
    %v591 = vmul.f32 %v348, %v514
    %v592 = vmul.f32 %v349, %v515
    %v593 = vadd.f32 %v585, %v589
    %v594 = vadd.f32 %v586, %v590
    %v595 = vadd.f32 %v587, %v591
    %v596 = vadd.f32 %v588, %v592
    %v597 = vtanh.pop %v593
    %v598 = vtanh.pop %v594
    %v599 = vtanh.pop %v595
    %v600 = vtanh.pop %v596
    %v601 = vmul.f32 %v581, %v597
    %v602 = vmul.f32 %v582, %v598
    %v603 = vmul.f32 %v583, %v599
    %v604 = vmul.f32 %v584, %v600
    %v605 = vmax.f32 %v601, 0.0
    %v606 = vmax.f32 %v602, 0.0
    %v607 = vmax.f32 %v603, 0.0
    %v608 = vmax.f32 %v604, 0.0
    %s609 = scalar_lea.vmem %s4, 8
    %v610 = vld [vmem:[%s609] sm:$0xff]
    %v612 = vsel %vm288, %v610, 0
    %614 = vmatpush.msra.mxu0 0.0
    %615 = vmatpush.msra.mxu0 0.0
    %616 = vmatpush.msra.mxu0 0.0
    %617 = vmatpush.msra.mxu0 0.0
    %618 = vmatpush.msra.mxu0 0.0
    %619 = vmatpush.msra.mxu0 0.0
    %620 = vmatpush.msra.mxu0 0.0
    %621 = vmatpush.msra.mxu0 0.0
    %622 = vmatpush.msra.mxu0 0.0
    %623 = vmatpush.msra.mxu0 0.0
    %624 = vmatpush.msra.mxu0 0.0
    %625 = vmatpush.msra.mxu0 0.0
    %626 = vmatpush.msra.mxu0 %v608
    %627 = vmatpush.msra.mxu0 %v607
    %628 = vmatpush.msra.mxu0 %v606
    %629 = vmatpush.msra.mxu0 %v605
    %630 = vmatmul.f32.gmra.mxu0 %v612
    %v631 = vpop.f32.mrf.mxu0
    %v632 = vadd.f32 0.0, %v631
    %633 = vdwg.mxu0
    %v635 = vsel %vm288, %v278, 0
    %637 = vmatpush.msra.mxu0 0.0
    %638 = vmatpush.msra.mxu0 0.0
    %639 = vmatpush.msra.mxu0 0.0
    %640 = vmatpush.msra.mxu0 0.0
    %641 = vmatpush.msra.mxu0 0.0
    %642 = vmatpush.msra.mxu0 0.0
    %643 = vmatpush.msra.mxu0 0.0
    %644 = vmatpush.msra.mxu0 0.0
    %645 = vmatpush.msra.mxu0 0.0
    %646 = vmatpush.msra.mxu0 0.0
    %647 = vmatpush.msra.mxu0 0.0
    %648 = vmatpush.msra.mxu0 0.0
    %649 = vmatpush.msra.mxu0 %v277
    %650 = vmatpush.msra.mxu0 %v276
    %651 = vmatpush.msra.mxu0 %v275
    %652 = vmatpush.msra.mxu0 %v274
    %653 = vmatmul.f32.gmra.mxu0 %v635
    %v654 = vpop.f32.mrf.mxu0
    %v655 = vadd.f32 %v632, %v654
    %656 = vdwg.mxu0
    %v657 = vperm.slane %v32, 2
    %v658 = vmul.f32 %v84, %v657
    %v659 = vmul.f32 %v89, %v657
    %v660 = vmul.f32 %v94, %v657
    %v661 = vmul.f32 %v99, %v657
    %v662 = vadd.f32 %v658, %v109
    %v663 = vadd.f32 %v659, %v114
    %v664 = vadd.f32 %v660, %v119
    %v665 = vadd.f32 %v661, %v124
    %666 = vmatpush.msra.mxu0 0.0
    %667 = vmatpush.msra.mxu0 0.0
    %668 = vmatpush.msra.mxu0 0.0
    %669 = vmatpush.msra.mxu0 0.0
    %670 = vmatpush.msra.mxu0 0.0
    %671 = vmatpush.msra.mxu0 0.0
    %672 = vmatpush.msra.mxu0 0.0
    %673 = vmatpush.msra.mxu0 0.0
    %674 = vmatpush.msra.mxu0 0.0
    %675 = vmatpush.msra.mxu0 0.0
    %676 = vmatpush.msra.mxu0 0.0
    %677 = vmatpush.msra.mxu0 0.0
    %678 = vmatpush.msra.mxu0 %v604
    %679 = vmatpush.msra.mxu0 %v603
    %680 = vmatpush.msra.mxu0 %v602
    %681 = vmatpush.msra.mxu0 %v601
    %682 = vmatmul.f32.gmra.mxu0 %v290
    %v683 = vpop.f32.mrf.mxu0
    %v684 = vadd.f32 0.0, %v683
    %685 = vmatmul.f32.gmra.mxu0 %v293
    %v686 = vpop.f32.mrf.mxu0
    %v687 = vadd.f32 0.0, %v686
    %688 = vmatmul.f32.gmra.mxu0 %v296
    %v689 = vpop.f32.mrf.mxu0
    %v690 = vadd.f32 0.0, %v689
    %691 = vmatmul.f32.gmra.mxu0 %v299
    %v692 = vpop.f32.mrf.mxu0
    %v693 = vadd.f32 0.0, %v692
    %694 = vdwg.mxu0
    %v695 = vadd.f32 %v662, %v684
    %v696 = vadd.f32 %v663, %v687
    %v697 = vadd.f32 %v664, %v690
    %v698 = vadd.f32 %v665, %v693
    %v699 = vmul.f32 %v695, 0.5
    %v700 = vmul.f32 %v696, 0.5
    %v701 = vmul.f32 %v697, 0.5
    %v702 = vmul.f32 %v698, 0.5
    %v703 = vtanh.pop %v699
    %v704 = vtanh.pop %v700
    %v705 = vtanh.pop %v701
    %v706 = vtanh.pop %v702
    %v707 = vmul.f32 %v703, 0.5
    %v708 = vmul.f32 %v704, 0.5
    %v709 = vmul.f32 %v705, 0.5
    %v710 = vmul.f32 %v706, 0.5
    %v711 = vadd.f32 %v707, 0.5
    %v712 = vadd.f32 %v708, 0.5
    %v713 = vadd.f32 %v709, 0.5
    %v714 = vadd.f32 %v710, 0.5
    %v715 = vmul.f32 %v353, %v657
    %v716 = vmul.f32 %v358, %v657
    %v717 = vmul.f32 %v363, %v657
    %v718 = vmul.f32 %v368, %v657
    %v719 = vadd.f32 %v715, %v377
    %v720 = vadd.f32 %v716, %v382
    %v721 = vadd.f32 %v717, %v387
    %v722 = vadd.f32 %v718, %v392
    %723 = vmatpush.msra.mxu0 0.0
    %724 = vmatpush.msra.mxu0 0.0
    %725 = vmatpush.msra.mxu0 0.0
    %726 = vmatpush.msra.mxu0 0.0
    %727 = vmatpush.msra.mxu0 0.0
    %728 = vmatpush.msra.mxu0 0.0
    %729 = vmatpush.msra.mxu0 0.0
    %730 = vmatpush.msra.mxu0 0.0
    %731 = vmatpush.msra.mxu0 0.0
    %732 = vmatpush.msra.mxu0 0.0
    %733 = vmatpush.msra.mxu0 0.0
    %734 = vmatpush.msra.mxu0 0.0
    %735 = vmatpush.msra.mxu0 %v604
    %736 = vmatpush.msra.mxu0 %v603
    %737 = vmatpush.msra.mxu0 %v602
    %738 = vmatpush.msra.mxu0 %v601
    %739 = vmatmul.f32.gmra.mxu0 %v399
    %v740 = vpop.f32.mrf.mxu0
    %v741 = vadd.f32 0.0, %v740
    %742 = vmatmul.f32.gmra.mxu0 %v402
    %v743 = vpop.f32.mrf.mxu0
    %v744 = vadd.f32 0.0, %v743
    %745 = vmatmul.f32.gmra.mxu0 %v405
    %v746 = vpop.f32.mrf.mxu0
    %v747 = vadd.f32 0.0, %v746
    %748 = vmatmul.f32.gmra.mxu0 %v408
    %v749 = vpop.f32.mrf.mxu0
    %v750 = vadd.f32 0.0, %v749
    %751 = vdwg.mxu0
    %v752 = vadd.f32 %v719, %v741
    %v753 = vadd.f32 %v720, %v744
    %v754 = vadd.f32 %v721, %v747
    %v755 = vadd.f32 %v722, %v750
    %v756 = vmul.f32 %v752, 0.5
    %v757 = vmul.f32 %v753, 0.5
    %v758 = vmul.f32 %v754, 0.5
    %v759 = vmul.f32 %v755, 0.5
    %v760 = vtanh.pop %v756
    %v761 = vtanh.pop %v757
    %v762 = vtanh.pop %v758
    %v763 = vtanh.pop %v759
    %v764 = vmul.f32 %v760, 0.5
    %v765 = vmul.f32 %v761, 0.5
    %v766 = vmul.f32 %v762, 0.5
    %v767 = vmul.f32 %v763, 0.5
    %v768 = vadd.f32 %v764, 0.5
    %v769 = vadd.f32 %v765, 0.5
    %v770 = vadd.f32 %v766, 0.5
    %v771 = vadd.f32 %v767, 0.5
    %v772 = vmul.f32 %v149, %v657
    %v773 = vmul.f32 %v154, %v657
    %v774 = vmul.f32 %v159, %v657
    %v775 = vmul.f32 %v164, %v657
    %v776 = vadd.f32 %v772, %v173
    %v777 = vadd.f32 %v773, %v178
    %v778 = vadd.f32 %v774, %v183
    %v779 = vadd.f32 %v775, %v188
    %780 = vmatpush.msra.mxu0 0.0
    %781 = vmatpush.msra.mxu0 0.0
    %782 = vmatpush.msra.mxu0 0.0
    %783 = vmatpush.msra.mxu0 0.0
    %784 = vmatpush.msra.mxu0 0.0
    %785 = vmatpush.msra.mxu0 0.0
    %786 = vmatpush.msra.mxu0 0.0
    %787 = vmatpush.msra.mxu0 0.0
    %788 = vmatpush.msra.mxu0 0.0
    %789 = vmatpush.msra.mxu0 0.0
    %790 = vmatpush.msra.mxu0 0.0
    %791 = vmatpush.msra.mxu0 0.0
    %792 = vmatpush.msra.mxu0 %v604
    %793 = vmatpush.msra.mxu0 %v603
    %794 = vmatpush.msra.mxu0 %v602
    %795 = vmatpush.msra.mxu0 %v601
    %796 = vmatmul.f32.gmra.mxu0 %v468
    %v797 = vpop.f32.mrf.mxu0
    %v798 = vadd.f32 0.0, %v797
    %799 = vmatmul.f32.gmra.mxu0 %v471
    %v800 = vpop.f32.mrf.mxu0
    %v801 = vadd.f32 0.0, %v800
    %802 = vmatmul.f32.gmra.mxu0 %v474
    %v803 = vpop.f32.mrf.mxu0
    %v804 = vadd.f32 0.0, %v803
    %805 = vmatmul.f32.gmra.mxu0 %v477
    %v806 = vpop.f32.mrf.mxu0
    %v807 = vadd.f32 0.0, %v806
    %808 = vdwg.mxu0
    %v809 = vadd.f32 %v776, %v798
    %v810 = vadd.f32 %v777, %v801
    %v811 = vadd.f32 %v778, %v804
    %v812 = vadd.f32 %v779, %v807
    %v813 = vtanh.pop %v809
    %v814 = vtanh.pop %v810
    %v815 = vtanh.pop %v811
    %v816 = vtanh.pop %v812
    %v817 = vmul.f32 %v201, %v657
    %v818 = vmul.f32 %v206, %v657
    %v819 = vmul.f32 %v211, %v657
    %v820 = vmul.f32 %v216, %v657
    %v821 = vadd.f32 %v817, %v225
    %v822 = vadd.f32 %v818, %v230
    %v823 = vadd.f32 %v819, %v235
    %v824 = vadd.f32 %v820, %v240
    %825 = vmatpush.msra.mxu0 0.0
    %826 = vmatpush.msra.mxu0 0.0
    %827 = vmatpush.msra.mxu0 0.0
    %828 = vmatpush.msra.mxu0 0.0
    %829 = vmatpush.msra.mxu0 0.0
    %830 = vmatpush.msra.mxu0 0.0
    %831 = vmatpush.msra.mxu0 0.0
    %832 = vmatpush.msra.mxu0 0.0
    %833 = vmatpush.msra.mxu0 0.0
    %834 = vmatpush.msra.mxu0 0.0
    %835 = vmatpush.msra.mxu0 0.0
    %836 = vmatpush.msra.mxu0 0.0
    %837 = vmatpush.msra.mxu0 %v604
    %838 = vmatpush.msra.mxu0 %v603
    %839 = vmatpush.msra.mxu0 %v602
    %840 = vmatpush.msra.mxu0 %v601
    %841 = vmatmul.f32.gmra.mxu0 %v525
    %v842 = vpop.f32.mrf.mxu0
    %v843 = vadd.f32 0.0, %v842
    %844 = vmatmul.f32.gmra.mxu0 %v528
    %v845 = vpop.f32.mrf.mxu0
    %v846 = vadd.f32 0.0, %v845
    %847 = vmatmul.f32.gmra.mxu0 %v531
    %v848 = vpop.f32.mrf.mxu0
    %v849 = vadd.f32 0.0, %v848
    %850 = vmatmul.f32.gmra.mxu0 %v534
    %v851 = vpop.f32.mrf.mxu0
    %v852 = vadd.f32 0.0, %v851
    %853 = vdwg.mxu0
    %v854 = vadd.f32 %v821, %v843
    %v855 = vadd.f32 %v822, %v846
    %v856 = vadd.f32 %v823, %v849
    %v857 = vadd.f32 %v824, %v852
    %v858 = vmul.f32 %v854, 0.5
    %v859 = vmul.f32 %v855, 0.5
    %v860 = vmul.f32 %v856, 0.5
    %v861 = vmul.f32 %v857, 0.5
    %v862 = vtanh.pop %v858
    %v863 = vtanh.pop %v859
    %v864 = vtanh.pop %v860
    %v865 = vtanh.pop %v861
    %v866 = vmul.f32 %v862, 0.5
    %v867 = vmul.f32 %v863, 0.5
    %v868 = vmul.f32 %v864, 0.5
    %v869 = vmul.f32 %v865, 0.5
    %v870 = vadd.f32 %v866, 0.5
    %v871 = vadd.f32 %v867, 0.5
    %v872 = vadd.f32 %v868, 0.5
    %v873 = vadd.f32 %v869, 0.5
    %v874 = vmul.f32 %v768, %v593
    %v875 = vmul.f32 %v769, %v594
    %v876 = vmul.f32 %v770, %v595
    %v877 = vmul.f32 %v771, %v596
    %v878 = vmul.f32 %v711, %v813
    %v879 = vmul.f32 %v712, %v814
    %v880 = vmul.f32 %v713, %v815
    %v881 = vmul.f32 %v714, %v816
    %v882 = vadd.f32 %v874, %v878
    %v883 = vadd.f32 %v875, %v879
    %v884 = vadd.f32 %v876, %v880
    %v885 = vadd.f32 %v877, %v881
    %v886 = vtanh.pop %v882
    %v887 = vtanh.pop %v883
    %v888 = vtanh.pop %v884
    %v889 = vtanh.pop %v885
    %v890 = vmul.f32 %v870, %v886
    %v891 = vmul.f32 %v871, %v887
    %v892 = vmul.f32 %v872, %v888
    %v893 = vmul.f32 %v873, %v889
    %v894 = vmax.f32 %v890, 0.0
    %v895 = vmax.f32 %v891, 0.0
    %v896 = vmax.f32 %v892, 0.0
    %v897 = vmax.f32 %v893, 0.0
    %s898 = scalar_lea.vmem %s4, 16
    %v899 = vld [vmem:[%s898] sm:$0xff]
    %v901 = vsel %vm288, %v899, 0
    %903 = vmatpush.msra.mxu0 0.0
    %904 = vmatpush.msra.mxu0 0.0
    %905 = vmatpush.msra.mxu0 0.0
    %906 = vmatpush.msra.mxu0 0.0
    %907 = vmatpush.msra.mxu0 0.0
    %908 = vmatpush.msra.mxu0 0.0
    %909 = vmatpush.msra.mxu0 0.0
    %910 = vmatpush.msra.mxu0 0.0
    %911 = vmatpush.msra.mxu0 0.0
    %912 = vmatpush.msra.mxu0 0.0
    %913 = vmatpush.msra.mxu0 0.0
    %914 = vmatpush.msra.mxu0 0.0
    %915 = vmatpush.msra.mxu0 %v897
    %916 = vmatpush.msra.mxu0 %v896
    %917 = vmatpush.msra.mxu0 %v895
    %918 = vmatpush.msra.mxu0 %v894
    %919 = vmatmul.f32.gmra.mxu0 %v901
    %v920 = vpop.f32.mrf.mxu0
    %v921 = vadd.f32 0.0, %v920
    %922 = vdwg.mxu0
    %v923 = vadd.f32 %v655, %v921
    %v924 = vld [vmem:[%s5] sm:$0xff]
    %926 = vset.pattern.permute.xlu0 0
    %927 = vperm.xlu0 %926, %v924
    %v928 = vpop.permute.xlu0 %927
    %v930 = vadd.f32 %v923, %v928
    %v931 = vmax.f32 %v930, 0.0
    %v932 = vld [vmem:[%s6] sm:$0xff]
    %934 = vset.pattern.permute.xlu0 0
    %935 = vperm.xlu0 %934, %v932
    %v936 = vpop.permute.xlu0 %935
    %v938 = vmul.f32 %v931, %v936
    %v939 = vrot.slane %v938, 4
    %v940 = vadd.f32 %v938, %v939
    %v941 = vrot.slane %v940, 2
    %v942 = vadd.f32 %v940, %v941
    %v943 = vrot.slane %v942, 1
    %v944 = vadd.f32 %v942, %v943
    %v945 = vld [vmem:[#allocation2] sm:$0x1]
    %947 = vset.pattern.permute.xlu0 0
    %948 = vperm.xlu0 %947, %v945
    %v949 = vpop.permute.xlu0 %948
    %v951 = vperm.slane %v949, 0
    %v952 = vadd.f32 %v944, %v951
    %953 = vst [vmem:[#allocation3] sm:$0x1] %v952
    // Predicated region
    $region34: #{tpu_custom_call.1} parent=1 // pred_check
      _
    $region35: #{tpu_custom_call.1} parent=1 // pred_check_branch
      %955 = sbr.rel (0) target = $region37
    $region36: #{tpu_custom_call.1} parent=1 // pred_region
      %957 = vsyncadd [#allocation4], 0
      %s959 = sshll.u32 [#allocation3], 4
      %s960 = int_to_ptr.vmem [resolvable:$true] %s959
      %s961 = sshll.u32 %s8, 4
      %s962 = int_to_ptr.hbm [resolvable:$true] %s961
      %964 = dma.vmem_to_hbm [thread:$0]  %s960, 16, %s962, [#allocation4]
    $region37: #{tpu_custom_call.1} parent=1 // pred_fallthru
      _
    // Predicated region
    $region38: #{tpu_custom_call.1} parent=1 // pred_check
      _
    $region39: #{tpu_custom_call.1} parent=1 // pred_check_branch
      %966 = sbr.rel (0) target = $region41
    $region40: #{tpu_custom_call.1} parent=1 // pred_region
      %968 = dma.done [#allocation4], 16
    $region41: #{tpu_custom_call.1} parent=1 // pred_fallthru
      _
    %969 = vsyncpa [#allocation4], 1

</llo_original>
